<compile_context>
chip_gen: v5e
topology: v5e:2x2
jax: 0.10.0
libtpu: 0.0.40
codegen_flags: <defaults>
</compile_context>

<pallas_src>
import functools
from typing import NamedTuple

import jax
import jax.numpy as jnp
from jax.experimental import pallas as pl
from jax.experimental.pallas import tpu as pltpu


# ---------------------------------------------------------------------------
# Kernels
# ---------------------------------------------------------------------------

def _expert_kernel_acc(x_ref, wgu_ref, wd_ref, o_ref, acc_ref, *, te):
    """One (token-tile, d_expert-chunk) step with an f32 VMEM accumulator."""
    e = pl.program_id(1)

    @pl.when(e == 0)
    def _init():
        acc_ref[...] = jnp.zeros_like(acc_ref)

    x = x_ref[...]                                            # (tm, d_hidden)
    # Fused gate|up projection: wgu block is [W_gate chunk e | W_up chunk e].
    gu = jnp.dot(x, wgu_ref[...], preferred_element_type=jnp.float32)
    gate = gu[:, :te]
    up = gu[:, te:]
    gate = gate * jax.nn.sigmoid(gate)                        # SiLU in f32 (VPU+EUP)
    h = (gate * up).astype(wd_ref.dtype)                      # back to MXU dtype
    acc_ref[...] += jnp.dot(h, wd_ref[...], preferred_element_type=jnp.float32)

    @pl.when(e == pl.num_programs(1) - 1)
    def _finalize():
        o_ref[...] = acc_ref[...].astype(o_ref.dtype)


def _expert_kernel_noacc(x_ref, wgu_ref, wd_ref, o_ref, *, te):
    """Whole d_expert resident: write the down-proj result directly."""
    x = x_ref[...]
    gu = jnp.dot(x, wgu_ref[...], preferred_element_type=jnp.float32)
    gate = gu[:, :te]
    up = gu[:, te:]
    gate = gate * jax.nn.sigmoid(gate)
    h = (gate * up).astype(wd_ref.dtype)
    o_ref[...] = jnp.dot(h, wd_ref[...],
                         preferred_element_type=jnp.float32).astype(o_ref.dtype)


# ---------------------------------------------------------------------------
# Hardware / tiling helpers
# ---------------------------------------------------------------------------

def _round_up(v, m):
    return ((v + m - 1) // m) * m


@functools.lru_cache(maxsize=None)
def _tpu_info():
    try:
        return pltpu.get_tpu_info()
    except Exception:
        return None


@functools.lru_cache(maxsize=None)
def _vmem_capacity_bytes():
    info = _tpu_info()
    cap = getattr(info, "vmem_capacity_bytes", None) if info is not None else None
    if not cap:
        cap = 64 * 1024 * 1024  # assume the smallest (v7x-class) VMEM
    return int(cap)


@functools.lru_cache(maxsize=None)
def _vmem_limit_bytes():
    return min(int(0.75 * _vmem_capacity_bytes()), 96 * 1024 * 1024)


@functools.lru_cache(maxsize=None)
def _num_tensorcores():
    info = _tpu_info()
    if info is not None:
        for attr in ("num_cores", "core_count", "tensorcore_count",
                     "num_tensorcores", "cores_per_chip"):
            v = getattr(info, attr, None)
            if isinstance(v, int) and v > 0:
                return v
    # Heuristic: v7x has 64 MiB VMEM per TC and 2 TCs/chip; v5e/v6e have
    # 128 MiB VMEM and a single TC.
    return 2 if _vmem_capacity_bytes() <= 80 * 1024 * 1024 else 1


def _footprint_bytes(tm, te, n_e, dh_p, w_isz, o_isz):
    """Whole VMEM footprint of one pipelined step (conservative)."""
    x_b = 2 * tm * dh_p * w_isz                       # double-buffered x tile
    w_b = 2 * (2 * dh_p * te + te * dh_p) * w_isz     # db fused gate|up + down chunk
    o_b = 2 * tm * dh_p * o_isz                       # double-buffered output tile
    acc_b = tm * dh_p * 4 if n_e > 1 else 0           # f32 accumulator scratch
    # f32 temporaries materialized in the body: gate|up result, silu*up product,
    # the narrow cast of h, and the down-proj f32 result before cast/accumulate.
    tmp_b = tm * (2 * te) * 4 + tm * te * 4 + tm * te * w_isz + tm * dh_p * 4
    return x_b + w_b + o_b + acc_b + tmp_b


def _tm_cap(vmem_limit):
    # 128-MiB-VMEM chips (v5e/v6e, limit ~96 MiB) can afford bigger token tiles
    # -> halves weight re-streaming; keep 256 on v7x-class 64 MiB VMEM.
    return 512 if vmem_limit >= 72 * 1024 * 1024 else 256


def _choose_te(dh_p, de_p, w_isz, o_isz=4, vmem_limit=None):
    """Largest d_expert chunk (divisor of de_p, 128-aligned, 256 preferred)
    whose full pipelined footprint fits the VMEM budget at the nominal tm."""
    if vmem_limit is None:
        vmem_limit = _vmem_limit_bytes()
    tm_nom = _tm_cap(vmem_limit)
    cands = sorted((d for d in range(128, de_p + 1, 128) if de_p % d == 0),
                   reverse=True)
    fitting = [d for d in cands
               if _footprint_bytes(tm_nom, d, de_p // d, dh_p, w_isz, o_isz)
               <= vmem_limit]
    if not fitting:
        return 128
    best = fitting[0]
    if best % 256:
        # Prefer a full-MXU-width (256-aligned) chunk if it is not much smaller.
        for d in fitting:
            if d % 256 == 0 and 3 * d >= 2 * best:
                return d
    return best


def _choose_tm(M, dh_p, te, n_e, w_isz, o_isz, vmem_limit):
    sub = max(8, 32 // w_isz)          # 16 for bf16, 8 for f32 (sublane packing)
    cap = _tm_cap(vmem_limit)
    while cap > sub and _footprint_bytes(cap, te, n_e, dh_p, w_isz, o_isz) > vmem_limit:
        cap //= 2
    if M > cap:
        n_i = -(-M // cap)
        return _round_up(-(-M // n_i), sub)   # balanced token tiles
    tm = M
    if M >= 4 * sub and _num_tensorcores() >= 2:
        # v7x megacore: make sure the "parallel" token axis has >= 2 tiles so
        # the second TensorCore gets work.
        tm = _round_up(-(-M // 2), sub)
    return tm


# ---------------------------------------------------------------------------
# pallas_call construction
# ---------------------------------------------------------------------------

def _build_expert_call(M, dh_p, de_p, tm, te, compute_dtype, out_dtype,
                       vmem_limit, weight_buffers):
    n_i = pl.cdiv(M, tm)
    n_e = de_p // te
    w_isz = jnp.dtype(compute_dtype).itemsize
    o_isz = jnp.dtype(out_dtype).itemsize

    # Weights are re-streamed per token tile only when d_expert is chunked
    # (grid-invariant blocks are not re-copied by the pipeline).
    weight_stream = n_i if n_e > 1 else 1
    cost = pl.CostEstimate(
        flops=6 * M * dh_p * de_p,
        transcendentals=M * de_p,
        bytes_accessed=(M * dh_p * w_isz
                        + weight_stream * 3 * dh_p * de_p * w_isz
                        + M * dh_p * o_isz),
    )

    def wspec(block_shape, index_map):
        # Optional deeper buffering of the streamed weight chunks (v5e sweep);
        # default path never touches pipeline_mode.
        if weight_buffers is not None and n_e > 1:
            return pl.BlockSpec(block_shape, index_map,
                                pipeline_mode=pl.Buffered(weight_buffers))
        return pl.BlockSpec(block_shape, index_map)

    if n_e == 1:
        kernel = functools.partial(_expert_kernel_noacc, te=te)
        grid = (n_i,)
        in_specs = [
            pl.BlockSpec((tm, dh_p), lambda i: (i, 0)),        # x
            wspec((dh_p, 2 * te), lambda i: (0, 0)),           # [W_gate | W_up]
            wspec((te, dh_p), lambda i: (0, 0)),               # W_down
        ]
        out_specs = pl.BlockSpec((tm, dh_p), lambda i: (i, 0))
        scratch_shapes = []
        dims = ("parallel",)
    else:
        kernel = functools.partial(_expert_kernel_acc, te=te)
        grid = (n_i, n_e)
        in_specs = [
            pl.BlockSpec((tm, dh_p), lambda i, e: (i, 0)),     # x
            wspec((dh_p, 2 * te), lambda i, e: (0, e)),        # [W_gate | W_up] chunk e
            wspec((te, dh_p), lambda i, e: (e, 0)),            # W_down chunk e
        ]
        out_specs = pl.BlockSpec((tm, dh_p), lambda i, e: (i, 0))
        scratch_shapes = [pltpu.VMEM((tm, dh_p), jnp.float32)]
        dims = ("parallel", "arbitrary")

    return pl.pallas_call(
        kernel,
        out_shape=jax.ShapeDtypeStruct((M, dh_p), out_dtype),
        grid_spec=pltpu.PrefetchScalarGridSpec(
            num_scalar_prefetch=0,
            grid=grid,
            in_specs=in_specs,
            out_specs=out_specs,
            scratch_shapes=scratch_shapes,
        ),
        compiler_params=pltpu.CompilerParams(
            dimension_semantics=dims,
            vmem_limit_bytes=vmem_limit,
        ),
        cost_estimate=cost,
    )


# ---------------------------------------------------------------------------
# Public API
# ---------------------------------------------------------------------------

class ExpertParams(NamedTuple):
    w_gate_up: jax.Array   # (dh_p, n_e * 2 * te): per-chunk [gate | up] interleave
    w_down: jax.Array      # (de_p, dh_p)
    d_hidden: int
    d_expert: int
    dh_p: int
    de_p: int
    te: int


def prepare_expert_weights(w_gate, w_up, w_down, *, compute_dtype=jnp.bfloat16,
                           te=None):
    """One-time weight prep: pad to 128 lanes, cast to the MXU dtype, and fuse
    W_gate/W_up into a single chunk-interleaved operand.  Do this at parameter
    setup, NOT per forward call."""
    d_hidden, d_expert = w_gate.shape
    assert w_up.shape == (d_hidden, d_expert)
    assert w_down.shape == (d_expert, d_hidden)

    dh_p = _round_up(d_hidden, 128)
    de_p = _round_up(d_expert, 128)
    w_isz = jnp.dtype(compute_dtype).itemsize
    if te is None:
        te = _choose_te(dh_p, de_p, w_isz)
    assert de_p % te == 0 and te % 128 == 0, "te must be a 128-multiple divisor"
    n_e = de_p // te

    pad_h = dh_p - d_hidden
    pad_e = de_p - d_expert
    wg = jnp.pad(w_gate, ((0, pad_h), (0, pad_e))).astype(compute_dtype)
    wu = jnp.pad(w_up, ((0, pad_h), (0, pad_e))).astype(compute_dtype)
    wd = jnp.pad(w_down, ((0, pad_e), (0, pad_h))).astype(compute_dtype)

    # Chunk-interleave so block e of the fused operand is [gate chunk e | up chunk e].
    wgu = jnp.concatenate(
        [wg.reshape(dh_p, n_e, te), wu.reshape(dh_p, n_e, te)], axis=2
    ).reshape(dh_p, n_e * 2 * te)

    return ExpertParams(w_gate_up=wgu, w_down=wd, d_hidden=d_hidden,
                        d_expert=d_expert, dh_p=dh_p, de_p=de_p, te=te)


def expert_forward(x, params: ExpertParams, *, tm=None, weight_buffers=None):
    """SwiGLU expert forward.  x: (M, d_hidden) -> (M, d_hidden) in x.dtype.

    Weights must come from prepare_expert_weights (bf16 is the production MXU
    dtype; compute_dtype=float32 there is a test-only numerics path — f32 is
    not MXU-native on v5e/v6e/v7x and doubles weight DMA bytes)."""
    M, d_hidden = x.shape
    assert d_hidden == params.d_hidden
    out_dtype = x.dtype
    dh_p, de_p, te = params.dh_p, params.de_p, params.te
    n_e = de_p // te
    compute_dtype = params.w_gate_up.dtype
    w_isz = jnp.dtype(compute_dtype).itemsize
    o_isz = jnp.dtype(out_dtype).itemsize
    sub = max(8, 32 // w_isz)
    vmem_limit = _vmem_limit_bytes()

    if dh_p != d_hidden:
        x = jnp.pad(x, ((0, 0), (0, dh_p - d_hidden)))
    xc = x.astype(compute_dtype)

    if tm is None:
        tm = _choose_tm(M, dh_p, te, n_e, w_isz, o_isz, vmem_limit)
    else:
        tm = min(tm, M)
        if tm != M:
            tm = max(sub, (tm // sub) * sub)

    call = _build_expert_call(M, dh_p, de_p, tm, te, compute_dtype, out_dtype,
                              vmem_limit, weight_buffers)
    out = call(xc, params.w_gate_up, params.w_down)
    if dh_p != d_hidden:
        out = out[:, :d_hidden]
    return out


def expert_forward_unprepared(x, w_gate, w_up, w_down, *,
                              compute_dtype=jnp.bfloat16, tm=None, te=None):
    """Convenience wrapper (re-prepares weights every call; prefer preparing once)."""
    params = prepare_expert_weights(w_gate, w_up, w_down,
                                    compute_dtype=compute_dtype, te=te)
    return expert_forward(x, params, tm=tm)


def _reference(x, w_gate, w_up, w_down):
    gate = jax.nn.silu(x @ w_gate)
    up = x @ w_up
    return (gate * up) @ w_down


if __name__ == "__main__":
    # Small deterministic config consistent with the module's __init__.
    config = {"d_hidden": 32, "d_expert": 64}
    M = 8
    d_hidden, d_expert = config["d_hidden"], config["d_expert"]

    key = jax.random.PRNGKey(0)
    kx, kg, ku, kd = jax.random.split(key, 4)
    x = jax.random.normal(kx, (M, d_hidden), dtype=jnp.float32)
    # Deterministic synthetic weights (the PyTorch module leaves them None to
    # be assigned externally); shapes follow x @ W_gate / W_up / W_down.
    w_gate = 0.05 * jax.random.normal(kg, (d_hidden, d_expert), dtype=jnp.float32)
    w_up = 0.05 * jax.random.normal(ku, (d_hidden, d_expert), dtype=jnp.float32)
    w_down = 0.05 * jax.random.normal(kd, (d_expert, d_hidden), dtype=jnp.float32)

    ref = _reference(x, w_gate, w_up, w_down)

    # Test-only f32 matmul path: numerically tight vs the reference.
    out_f32 = jax.block_until_ready(
        expert_forward_unprepared(x, w_gate, w_up, w_down,
                                  compute_dtype=jnp.float32))
    assert out_f32.shape == (M, d_hidden)
    assert jnp.allclose(out_f32, ref, atol=2e-3, rtol=2e-3), "f32 mismatch"

    # Production path: weights prepared once (padded, bf16-cast, gate/up fused).
    params = prepare_expert_weights(w_gate, w_up, w_down)
    out_bf16 = jax.block_until_ready(expert_forward(x, params))
    assert out_bf16.shape == (M, d_hidden)
    assert jnp.allclose(out_bf16, ref, atol=2e-2, rtol=2e-2), "bf16 mismatch"

    # Multi-chunk reduction path (te forced to 128 -> n_e=3) with several
    # token tiles and padding on both feature dims.
    M2, dh2, de2 = 48, 96, 320
    k2 = jax.random.split(jax.random.PRNGKey(0), 4)
    x2 = jax.random.normal(k2[0], (M2, dh2), dtype=jnp.float32)
    wg2 = 0.05 * jax.random.normal(k2[1], (dh2, de2), dtype=jnp.float32)
    wu2 = 0.05 * jax.random.normal(k2[2], (dh2, de2), dtype=jnp.float32)
    wd2 = 0.05 * jax.random.normal(k2[3], (de2, dh2), dtype=jnp.float32)
    ref2 = _reference(x2, wg2, wu2, wd2)
    params2 = prepare_expert_weights(wg2, wu2, wd2, te=128)
    out2 = jax.block_until_ready(expert_forward(x2, params2, tm=16))
    assert out2.shape == (M2, dh2)
    assert jnp.allclose(out2, ref2, atol=2e-2, rtol=2e-2), "chunked-path mismatch"

    print("KERNEL_OK")
</pallas_src>

<mosaic_0001>
module attributes {stable_mosaic.version = 11 : i64} {
  func.func @_expert_kernel_noacc(%arg0: i32, %arg1: memref<8x128xf32, #tpu.memory_space<vmem>>, %arg2: memref<128x256xf32, #tpu.memory_space<vmem>>, %arg3: memref<128x128xf32, #tpu.memory_space<vmem>>, %arg4: memref<8x128xf32, #tpu.memory_space<vmem>>) attributes {dimension_semantics = [#tpu.dimension_semantics<parallel>], iteration_bounds = array<i64: 1>, scalar_prefetch = 0 : i64, scratch_operands = 0 : i64, tpu.core_type = #tpu.core_type<tc>, window_params = [{transform_indices = @transform_0, window_bounds = array<i64: 8, 128>}, {pipeline_mode = #tpu.pipeline_mode<synchronous>, transform_indices = @transform_1, window_bounds = array<i64: 128, 256>}, {pipeline_mode = #tpu.pipeline_mode<synchronous>, transform_indices = @transform_2, window_bounds = array<i64: 128, 128>}, {transform_indices = @transform_3, window_bounds = array<i64: 8, 128>}]} {
    %c0 = arith.constant 0 : index
    %c0_0 = arith.constant 0 : index
    %0 = vector.load %arg1[%c0, %c0_0] : memref<8x128xf32, #tpu.memory_space<vmem>>, vector<8x128xf32>
    %c0_1 = arith.constant 0 : index
    %c0_2 = arith.constant 0 : index
    %1 = vector.load %arg2[%c0_1, %c0_2] : memref<128x256xf32, #tpu.memory_space<vmem>>, vector<128x256xf32>
    %cst = arith.constant dense<0.000000e+00> : vector<8x256xf32>
    %2 = tpu.matmul %0, %1, %cst {dimension_numbers = #tpu.dot_dimension_numbers<[1], [0], [0], [1], [0, 0, 1, 1], [], []>} : vector<8x128xf32>, vector<128x256xf32>, vector<8x256xf32> -> vector<8x256xf32>
    %3 = vector.extract_strided_slice %2 {offsets = [0, 0], sizes = [8, 128], strides = [1, 1]} : vector<8x256xf32> to vector<8x128xf32>
    %4 = vector.extract_strided_slice %2 {offsets = [0, 128], sizes = [8, 128], strides = [1, 1]} : vector<8x256xf32> to vector<8x128xf32>
    %5 = arith.negf %3 : vector<8x128xf32>
    %6 = math.exp %5 : vector<8x128xf32>
    %cst_3 = arith.constant 1.000000e+00 : f32
    %7 = vector.broadcast %cst_3 : f32 to vector<8x128xf32>
    %8 = arith.addf %7, %6 : vector<8x128xf32>
    %9 = arith.divf %7, %8 : vector<8x128xf32>
    %10 = arith.mulf %3, %9 : vector<8x128xf32>
    %11 = arith.mulf %10, %4 : vector<8x128xf32>
    %c0_4 = arith.constant 0 : index
    %c0_5 = arith.constant 0 : index
    %12 = vector.load %arg3[%c0_4, %c0_5] : memref<128x128xf32, #tpu.memory_space<vmem>>, vector<128x128xf32>
    %cst_6 = arith.constant dense<0.000000e+00> : vector<8x128xf32>
    %13 = tpu.matmul %11, %12, %cst_6 {dimension_numbers = #tpu.dot_dimension_numbers<[1], [0], [0], [1], [0, 0, 1, 1], [], []>} : vector<8x128xf32>, vector<128x128xf32>, vector<8x128xf32> -> vector<8x128xf32>
    %c0_7 = arith.constant 0 : index
    %c0_8 = arith.constant 0 : index
    %14 = vector.load %arg4[%c0_7, %c0_8] : memref<8x128xf32, #tpu.memory_space<vmem>>, vector<8x128xf32>
    tpu.vector_store %arg4[%c0_7, %c0_8], %13 {strides = array<i32>} : memref<8x128xf32, #tpu.memory_space<vmem>>, vector<8x128xf32>,
    return
  }
  func.func @transform_0(%arg0: i32) -> (i32, i32) {
    %c0_i32 = arith.constant 0 : i32
    %c0_i32_0 = arith.constant 0 : i32
    return %arg0, %c0_i32 : i32, i32
  }
  func.func @transform_1(%arg0: i32) -> (i32, i32) {
    %c0_i32 = arith.constant 0 : i32
    %c0_i32_0 = arith.constant 0 : i32
    %c0_i32_1 = arith.constant 0 : i32
    return %c0_i32, %c0_i32_0 : i32, i32
  }
  func.func @transform_2(%arg0: i32) -> (i32, i32) {
    %c0_i32 = arith.constant 0 : i32
    %c0_i32_0 = arith.constant 0 : i32
    %c0_i32_1 = arith.constant 0 : i32
    return %c0_i32, %c0_i32_0 : i32, i32
  }
  func.func @transform_3(%arg0: i32) -> (i32, i32) {
    %c0_i32 = arith.constant 0 : i32
    %c0_i32_0 = arith.constant 0 : i32
    return %arg0, %c0_i32 : i32, i32
  }
}

</mosaic_0001>

<llo_original>
// kernel: tpu_custom_call.1
$region0: #{tpu_custom_call.1}
  #allocation0 [shape = 'u32[]', space=smem, size = 0x4, offset = 0x4, fixed_abs, tag = 'smem constant byte address 0x4 - core index']
  #allocation1 [shape = 'u32[72,128]{1,0:T(1,128)}', space=vmem, size = 0x9000, scoped, tag = 'internal scratch']
  %s0 = inlined_call_operand.hbm [shape: f32[8,128], index: 0, kind: input, shape index: {}]
  %s1 = inlined_call_operand.hbm [shape: f32[128,256], index: 1, kind: input, shape index: {}]
  %s2 = inlined_call_operand.hbm [shape: f32[128,128], index: 2, kind: input, shape index: {}]
  %s3 = inlined_call_operand.hbm [shape: f32[8,128], index: 3, kind: output, shape index: {}]
  %s4 = sld [smem:[#allocation0]]
  $region34: #{tpu_custom_call.1} parent=0
    _
  %s6 = ssub.s32 1, %s4
  %s7 = scalar_select 0, %s6, %s4
  $region1: #{tpu_custom_call.1} parent=0
    #allocation2 [shape = 'u8[4096]{0}', space=vmem, size = 0x1000, scoped, tag = 'input window, operand 0, single buffered']
    #allocation3 [shape = 's32[1]{0}', space=sflag, size = 0x4, scoped, tag = 'scoped memory for tpu_custom_call.1']
    #allocation4 [shape = 's32[1]{0}', space=sflag, size = 0x4, scoped, tag = 'scoped memory for tpu_custom_call.1']
    #allocation5 [shape = 'u8[131072]{0}', space=vmem, size = 0x20000, scoped, tag = 'input window, operand 1, single buffered']
    #allocation6 [shape = 's32[1]{0}', space=sflag, size = 0x4, scoped, tag = 'scoped memory for tpu_custom_call.1']
    #allocation7 [shape = 'u8[65536]{0}', space=vmem, size = 0x10000, scoped, tag = 'input window, operand 2, single buffered']
    #allocation8 [shape = 'u8[4096]{0}', space=vmem, size = 0x1000, scoped, tag = 'output window, operand 0, single buffered']
    %8 = vsyncpa [#allocation3], 0
    %9 = vsyncpa [#allocation6], 0
    %10 = vsyncpa [#allocation4], 0
    // Predicated region
    $region2: #{tpu_custom_call.1} parent=1 // pred_check
      _
    $region3: #{tpu_custom_call.1} parent=1 // pred_check_branch
      %12 = sbr.rel (0) target = $region5
    $region4: #{tpu_custom_call.1} parent=1 // pred_region
      %14 = vsyncadd [#allocation3], 0
      %s16 = sshll.u32 %s0, 4
      %s17 = int_to_ptr.hbm [resolvable:$true] %s16
      %s18 = sshll.u32 [#allocation2], 4
      %s19 = int_to_ptr.vmem [resolvable:$true] %s18
      %21 = dma.hbm_to_vmem [thread:$0]  %s17, 128, %s19, [#allocation3]
    $region5: #{tpu_custom_call.1} parent=1 // pred_fallthru
      _
    // Predicated region
    $region6: #{tpu_custom_call.1} parent=1 // pred_check
      _
    $region7: #{tpu_custom_call.1} parent=1 // pred_check_branch
      %23 = sbr.rel (0) target = $region9
    $region8: #{tpu_custom_call.1} parent=1 // pred_region
      %25 = vsyncadd [#allocation6], 0
      %s26 = sshll.u32 %s1, 4
      %s27 = int_to_ptr.hbm [resolvable:$true] %s26
      %s28 = sshll.u32 [#allocation5], 4
      %s29 = int_to_ptr.vmem [resolvable:$true] %s28
      %34 = dma.hbm_to_vmem [thread:$0]  %s27, 4096, %s29, [#allocation6], 256, 256, 16
    $region9: #{tpu_custom_call.1} parent=1 // pred_fallthru
      _
    // Predicated region
    $region10: #{tpu_custom_call.1} parent=1 // pred_check
      _
    $region11: #{tpu_custom_call.1} parent=1 // pred_check_branch
      %36 = sbr.rel (0) target = $region13
    $region12: #{tpu_custom_call.1} parent=1 // pred_region
      %38 = vsyncadd [#allocation6], 0
      %s39 = sshll.u32 %s2, 4
      %s40 = int_to_ptr.hbm [resolvable:$true] %s39
      %s41 = sshll.u32 [#allocation7], 4
      %s42 = int_to_ptr.vmem [resolvable:$true] %s41
      %47 = dma.hbm_to_vmem [thread:$0]  %s40, 2048, %s42, [#allocation6], 128, 128, 8
    $region13: #{tpu_custom_call.1} parent=1 // pred_fallthru
      _
    // Predicated region
    $region14: #{tpu_custom_call.1} parent=1 // pred_check
      _
    $region15: #{tpu_custom_call.1} parent=1 // pred_check_branch
      %49 = sbr.rel (0) target = $region17
    $region16: #{tpu_custom_call.1} parent=1 // pred_region
      %51 = dma.done [#allocation3], 128
    $region17: #{tpu_custom_call.1} parent=1 // pred_fallthru
      _
    // Predicated region
    $region18: #{tpu_custom_call.1} parent=1 // pred_check
      _
    $region19: #{tpu_custom_call.1} parent=1 // pred_check_branch
      %53 = sbr.rel (0) target = $region21
    $region20: #{tpu_custom_call.1} parent=1 // pred_region
      %55 = dma.done [#allocation6], 4096
    $region21: #{tpu_custom_call.1} parent=1 // pred_fallthru
      _
    // Predicated region
    $region22: #{tpu_custom_call.1} parent=1 // pred_check
      _
    $region23: #{tpu_custom_call.1} parent=1 // pred_check_branch
      %57 = sbr.rel (0) target = $region25
    $region24: #{tpu_custom_call.1} parent=1 // pred_region
      %59 = dma.done [#allocation6], 2048
    $region25: #{tpu_custom_call.1} parent=1 // pred_fallthru
      _
    %v60 = vld [vmem:[#allocation2] sm:$0xff]
    %v61 = vld [vmem:[#allocation5] sm:$0xff]
    %v62 = vld [vmem:[#allocation5 + $0x8] sm:$0xff]
    %v63 = vld [vmem:[#allocation5 + $0x10] sm:$0xff]
    %v64 = vld [vmem:[#allocation5 + $0x18] sm:$0xff]
    %v65 = vld [vmem:[#allocation5 + $0x20] sm:$0xff]
    %v66 = vld [vmem:[#allocation5 + $0x28] sm:$0xff]
    %v67 = vld [vmem:[#allocation5 + $0x30] sm:$0xff]
    %v68 = vld [vmem:[#allocation5 + $0x38] sm:$0xff]
    %v69 = vld [vmem:[#allocation5 + $0x40] sm:$0xff]
    %v70 = vld [vmem:[#allocation5 + $0x48] sm:$0xff]
    %v71 = vld [vmem:[#allocation5 + $0x50] sm:$0xff]
    %v72 = vld [vmem:[#allocation5 + $0x58] sm:$0xff]
    %v73 = vld [vmem:[#allocation5 + $0x60] sm:$0xff]
    %v74 = vld [vmem:[#allocation5 + $0x68] sm:$0xff]
    %v75 = vld [vmem:[#allocation5 + $0x70] sm:$0xff]
    %v76 = vld [vmem:[#allocation5 + $0x78] sm:$0xff]
    %v77 = vld [vmem:[#allocation5 + $0x80] sm:$0xff]
    %v78 = vld [vmem:[#allocation5 + $0x88] sm:$0xff]
    %v79 = vld [vmem:[#allocation5 + $0x90] sm:$0xff]
    %v80 = vld [vmem:[#allocation5 + $0x98] sm:$0xff]
    %v81 = vld [vmem:[#allocation5 + $0xa0] sm:$0xff]
    %v82 = vld [vmem:[#allocation5 + $0xa8] sm:$0xff]
    %v83 = vld [vmem:[#allocation5 + $0xb0] sm:$0xff]
    %v84 = vld [vmem:[#allocation5 + $0xb8] sm:$0xff]
    %v85 = vld [vmem:[#allocation5 + $0xc0] sm:$0xff]
    %v86 = vld [vmem:[#allocation5 + $0xc8] sm:$0xff]
    %v87 = vld [vmem:[#allocation5 + $0xd0] sm:$0xff]
    %v88 = vld [vmem:[#allocation5 + $0xd8] sm:$0xff]
    %v89 = vld [vmem:[#allocation5 + $0xe0] sm:$0xff]
    %v90 = vld [vmem:[#allocation5 + $0xe8] sm:$0xff]
    %v91 = vld [vmem:[#allocation5 + $0xf0] sm:$0xff]
    %v92 = vld [vmem:[#allocation5 + $0xf8] sm:$0xff]
    %93 = vmatpush.msra.mxu0 %v91
    %94 = vmatpush.msra.mxu0 %v89
    %95 = vmatpush.msra.mxu0 %v87
    %96 = vmatpush.msra.mxu0 %v85
    %97 = vmatpush.msra.mxu0 %v83
    %98 = vmatpush.msra.mxu0 %v81
    %99 = vmatpush.msra.mxu0 %v79
    %100 = vmatpush.msra.mxu0 %v77
    %101 = vmatpush.msra.mxu0 %v75
    %102 = vmatpush.msra.mxu0 %v73
    %103 = vmatpush.msra.mxu0 %v71
    %104 = vmatpush.msra.mxu0 %v69
    %105 = vmatpush.msra.mxu0 %v67
    %106 = vmatpush.msra.mxu0 %v65
    %107 = vmatpush.msra.mxu0 %v63
    %108 = vmatpush.msra.mxu0 %v61
    %109 = vmatmul.f32.gmra.mxu0 %v60
    %v110 = vpop.f32.mrf.mxu0
    %v111 = vadd.f32 0.0, %v110
    %112 = vdwg.mxu0
    %113 = vmatpush.msra.mxu0 %v92
    %114 = vmatpush.msra.mxu0 %v90
    %115 = vmatpush.msra.mxu0 %v88
    %116 = vmatpush.msra.mxu0 %v86
    %117 = vmatpush.msra.mxu0 %v84
    %118 = vmatpush.msra.mxu0 %v82
    %119 = vmatpush.msra.mxu0 %v80
    %120 = vmatpush.msra.mxu0 %v78
    %121 = vmatpush.msra.mxu0 %v76
    %122 = vmatpush.msra.mxu0 %v74
    %123 = vmatpush.msra.mxu0 %v72
    %124 = vmatpush.msra.mxu0 %v70
    %125 = vmatpush.msra.mxu0 %v68
    %126 = vmatpush.msra.mxu0 %v66
    %127 = vmatpush.msra.mxu0 %v64
    %128 = vmatpush.msra.mxu0 %v62
    %129 = vmatmul.f32.gmra.mxu0 %v60
    %v130 = vpop.f32.mrf.mxu0
    %v131 = vadd.f32 0.0, %v130
    %132 = vdwg.mxu0
    %v133 = vxor.u32 %v111, 2147483648
    %v134 = vmul.f32 %v133, 1.442695
    %v135 = vpow.pop %v134
    %v136 = vadd.f32 %v135, 1.0
    %v137 = vrcp.pop %v136
    %v138 = vmul.f32 %v136, %v137
    %v139 = vsub.f32 1.0, %v138
    %v140 = vmul.f32 %v137, %v139
    %v141 = vadd.f32 %v137, %v140
    %vm142 = vweird.f32 %v136
    %vm143 = vweird.f32 %v137
    %vm144 = vmor %vm142, %vm143
    %v145 = vsel %vm144, %v137, %v141
    %v146 = vand.u32 2147483647, %v136
    %vm147 = vcmp.eq.f32.partialorder %v146, 8.507059e+37
    %v148 = vand.u32 %v136, 2147483648
    %v149 = vor.u32 1.1754944e-38, %v148
    %v150 = vsel %vm147, %v149, %v145
    %v151 = vmul.f32 1.0, %v150
    %v152 = vmul.f32 %v111, %v151
    %v153 = vmul.f32 %v152, %v131
    %v154 = vld [vmem:[#allocation7] sm:$0xff]
    %v155 = vld [vmem:[#allocation7 + $0x8] sm:$0xff]
    %v156 = vld [vmem:[#allocation7 + $0x10] sm:$0xff]
    %v157 = vld [vmem:[#allocation7 + $0x18] sm:$0xff]
    %v158 = vld [vmem:[#allocation7 + $0x20] sm:$0xff]
    %v159 = vld [vmem:[#allocation7 + $0x28] sm:$0xff]
    %v160 = vld [vmem:[#allocation7 + $0x30] sm:$0xff]
    %v161 = vld [vmem:[#allocation7 + $0x38] sm:$0xff]
    %v162 = vld [vmem:[#allocation7 + $0x40] sm:$0xff]
    %v163 = vld [vmem:[#allocation7 + $0x48] sm:$0xff]
    %v164 = vld [vmem:[#allocation7 + $0x50] sm:$0xff]
    %v165 = vld [vmem:[#allocation7 + $0x58] sm:$0xff]
    %v166 = vld [vmem:[#allocation7 + $0x60] sm:$0xff]
    %v167 = vld [vmem:[#allocation7 + $0x68] sm:$0xff]
    %v168 = vld [vmem:[#allocation7 + $0x70] sm:$0xff]
    %v169 = vld [vmem:[#allocation7 + $0x78] sm:$0xff]
    %170 = vmatpush.msra.mxu0 %v169
    %171 = vmatpush.msra.mxu0 %v168
    %172 = vmatpush.msra.mxu0 %v167
    %173 = vmatpush.msra.mxu0 %v166
    %174 = vmatpush.msra.mxu0 %v165
    %175 = vmatpush.msra.mxu0 %v164
    %176 = vmatpush.msra.mxu0 %v163
    %177 = vmatpush.msra.mxu0 %v162
    %178 = vmatpush.msra.mxu0 %v161
    %179 = vmatpush.msra.mxu0 %v160
    %180 = vmatpush.msra.mxu0 %v159
    %181 = vmatpush.msra.mxu0 %v158
    %182 = vmatpush.msra.mxu0 %v157
    %183 = vmatpush.msra.mxu0 %v156
    %184 = vmatpush.msra.mxu0 %v155
    %185 = vmatpush.msra.mxu0 %v154
    %186 = vmatmul.f32.gmra.mxu0 %v153
    %v187 = vpop.f32.mrf.mxu0
    %v188 = vadd.f32 0.0, %v187
    %189 = vdwg.mxu0
    %190 = vst [vmem:[#allocation8] sm:$0xff] %v188
    // Predicated region
    $region26: #{tpu_custom_call.1} parent=1 // pred_check
      _
    $region27: #{tpu_custom_call.1} parent=1 // pred_check_branch
      %192 = sbr.rel (0) target = $region29
    $region28: #{tpu_custom_call.1} parent=1 // pred_region
      %194 = vsyncadd [#allocation4], 0
      %s196 = sshll.u32 [#allocation8], 4
      %s197 = int_to_ptr.vmem [resolvable:$true] %s196
      %s198 = sshll.u32 %s3, 4
      %s199 = int_to_ptr.hbm [resolvable:$true] %s198
      %201 = dma.vmem_to_hbm [thread:$0]  %s197, 128, %s199, [#allocation4]
    $region29: #{tpu_custom_call.1} parent=1 // pred_fallthru
      _
    // Predicated region
    $region30: #{tpu_custom_call.1} parent=1 // pred_check
      _
    $region31: #{tpu_custom_call.1} parent=1 // pred_check_branch
      %203 = sbr.rel (0) target = $region33
    $region32: #{tpu_custom_call.1} parent=1 // pred_region
      %205 = dma.done [#allocation4], 128
    $region33: #{tpu_custom_call.1} parent=1 // pred_fallthru
      _
    %206 = vsyncpa [#allocation3], 1
    %207 = vsyncpa [#allocation6], 1
    %208 = vsyncpa [#allocation4], 1

</llo_original>
